<compile_context>
chip_gen: v7x
topology: tpu7x:2x2x1
jax: 0.10.0
libtpu: 0.0.40
codegen_flags: <defaults>
</compile_context>

<pallas_src>
import functools

import jax
import jax.numpy as jnp
from jax import lax
from jax.experimental import pallas as pl
from jax.experimental.pallas import tpu as pltpu

EPS = 1e-12
_LANES = 128
_SUBLANES = 8
_FASTPATH_ELEMS = 1 << 16          # below this, plain jnp beats a grid launch


def _round_up(x, m):
    return ((x + m - 1) // m) * m


def _device_kind():
    try:
        return jax.devices()[0].device_kind.lower()
    except Exception:
        return ""


def _target_block_bytes():
    kind = _device_kind()
    if "v7" in kind:
        return 8 << 20      # 2x double-buffered = 16 MiB, fits v7x's 64 MiB VMEM / 32 MiB scoped
    if "v6" in kind:
        return 8 << 20      # well under v6e's 32 MiB scoped default
    return 4 << 20          # v5e (16 MiB scoped default) / unknown chip


def _num_tensorcores():
    # Among the targeted generations only v7x has 2 TensorCores per chip.
    return 2 if "v7" in _device_kind() else 1


def _entropy_partial_kernel(x_ref, o_ref, *, rows, tile_rows, steps_per_core,
                            n_tiles, mask_last, has_overhang, two_core):
    """Accumulates sum(x*log(x+eps)) folded into a per-core (1,8,128) partial."""
    if two_core:
        c = pl.program_id(0)              # parallel (TensorCore) axis
        i = pl.program_id(1)              # arbitrary (reduction) axis
        t = c * steps_per_core + i        # virtual tile index
        is_first = i == 0
    else:
        t = pl.program_id(0)
        is_first = t == 0

    @pl.when(is_first)
    def _():
        o_ref[...] = jnp.zeros_like(o_ref)

    def accumulate(with_mask):
        x = x_ref[...].astype(jnp.float32)
        contrib = x * jnp.log(x + EPS)
        if with_mask:
            # True select (NOT multiply-by-mask) so NaN/Inf from log() of
            # edge-block padding garbage never reaches the sum.
            row_ids = t * tile_rows + lax.broadcasted_iota(
                jnp.int32, (tile_rows, _LANES), 0)
            contrib = jnp.where(row_ids < rows, contrib, 0.0)
        # Fold rows into sublane groups of 8: per-step reduce is pure VPU adds
        # into a vreg-shaped accumulator; the only cross-lane reduce is the
        # tiny wrapper-side sum at the end.
        o_ref[...] += contrib.reshape(-1, _SUBLANES, _LANES).sum(axis=0)[None]

    if mask_last:
        @pl.when(t < n_tiles - 1)
        def _():
            accumulate(False)

        @pl.when(t == n_tiles - 1)
        def _():
            accumulate(True)
        # t >= n_tiles (overhang tile on an odd split): skip entirely.
    elif has_overhang:
        @pl.when(t < n_tiles)
        def _():
            accumulate(False)
    else:
        accumulate(False)


def _plogp_sum(v):
    v = v.astype(jnp.float32)
    return jnp.sum(v * jnp.log(v + EPS))


def entropy_loss(x, *, max_block_bytes=None):
    """Pallas implementation of EntropyLossEncap.forward (channel axis = 1)."""
    x = jnp.asarray(x)
    assert x.ndim >= 2, "EntropyLoss expects at least (N, C, ...)"
    num_channels = x.shape[1]
    numel = x.size
    denom = numel // num_channels          # rows of the permuted (-1, C) view

    flat = x.reshape(-1)                   # native dtype; layout-only reshape

    # Small-input fast path: launch + per-step overhead would dominate.
    if numel < _FASTPATH_ELEMS:
        return (-_plogp_sum(flat) / jnp.float32(denom)).astype(jnp.float32)

    itemsize = x.dtype.itemsize
    sublane_mult = _SUBLANES * max(1, 4 // itemsize)   # 8 f32, 16 bf16, 32 i8/fp8

    # Zero-copy common case: numel % 128 == 0 -> stream the whole buffer.
    # rows not a multiple of 8 / tile_rows is handled by the in-kernel mask.
    main_elems = (numel // _LANES) * _LANES
    tail_sum = jnp.float32(0.0)
    if main_elems < numel:
        # TODO(synk): flat[:main_elems] materializes a near-full sliced HBM copy
        # for lane-ragged inputs (numel % 128 != 0); a 1-D BlockSpec with
        # in-kernel element masking would avoid it.
        tail_sum = _plogp_sum(flat[main_elems:])
        flat = flat[:main_elems]

    x2d = flat.reshape(-1, _LANES)         # (rows, 128)
    rows = x2d.shape[0]

    block_bytes = max_block_bytes if max_block_bytes is not None else _target_block_bytes()
    tile_rows = max(sublane_mult,
                    (block_bytes // (_LANES * itemsize)) // sublane_mult * sublane_mult)
    tile_rows = min(tile_rows, _round_up(rows, sublane_mult))
    n_tiles = pl.cdiv(rows, tile_rows)

    num_cores = _num_tensorcores() if n_tiles >= 2 else 1
    if num_cores == 2 and n_tiles % 2 == 1:
        # Nudge the tile count even so both TensorCores get the same number of
        # real tiles (no extra full block of DMA+log on one core's crit path).
        tile_rows = max(sublane_mult,
                        _round_up(pl.cdiv(rows, n_tiles + 1), sublane_mult))
        n_tiles = pl.cdiv(rows, tile_rows)

    spc = pl.cdiv(n_tiles, num_cores)      # steps per core
    has_overhang = num_cores * spc > n_tiles
    mask_last = (rows % tile_rows) != 0

    kernel = functools.partial(
        _entropy_partial_kernel,
        rows=rows, tile_rows=tile_rows, steps_per_core=spc, n_tiles=n_tiles,
        mask_last=mask_last, has_overhang=has_overhang,
        two_core=(num_cores == 2))

    if num_cores == 2:
        grid = (num_cores, spc)
        semantics = ("parallel", "arbitrary")
        if has_overhang:
            in_map = lambda c, i: (jnp.minimum(c * spc + i, n_tiles - 1), 0)
        else:
            in_map = lambda c, i: (c * spc + i, 0)
        out_map = lambda c, i: (c, 0, 0)
    else:
        grid = (n_tiles,)
        semantics = ("arbitrary",)
        in_map = lambda i: (i, 0)
        out_map = lambda i: (0, 0, 0)

    block_bytes_actual = tile_rows * _LANES * itemsize
    vmem_limit = int(min(2 * block_bytes_actual + (8 << 20), 48 << 20))

    # NOTE: if profiling on v7x still shows exposed DMA, pipeline_mode=
    # pl.Buffered(3) on the input BlockSpec is the next cheap sweep.
    partial = pl.pallas_call(
        kernel,
        out_shape=jax.ShapeDtypeStruct((num_cores, _SUBLANES, _LANES),
                                       jnp.float32),
        grid=grid,
        in_specs=[pl.BlockSpec((tile_rows, _LANES), in_map)],
        out_specs=pl.BlockSpec((1, _SUBLANES, _LANES), out_map),
        compiler_params=pltpu.CompilerParams(
            dimension_semantics=semantics,
            vmem_limit_bytes=vmem_limit),
        cost_estimate=pl.CostEstimate(
            flops=3 * main_elems,
            transcendentals=main_elems,
            bytes_accessed=main_elems * itemsize
            + 4 * num_cores * _SUBLANES * _LANES),
    )(x2d)

    total = jnp.sum(partial) + tail_sum
    return (-total / jnp.float32(denom)).astype(jnp.float32)


def _entropy_loss_ref(x):
    xf = x.astype(jnp.float32)
    b = xf * jnp.log(xf + EPS)
    b = -1.0 * b.sum(axis=1)
    return b.mean()


if __name__ == "__main__":
    key = jax.random.PRNGKey(0)
    k1, k2 = jax.random.split(key)

    # 1) Small NCHW input (typical entropy-loss usage: softmax over channels).
    #    Exercises the small-input fast path.
    x_small = jax.nn.softmax(
        jax.random.uniform(k1, (2, 4, 16, 16), dtype=jnp.float32), axis=1)
    out_small = jax.block_until_ready(entropy_loss(x_small))
    ref_small = _entropy_loss_ref(x_small)
    assert jnp.allclose(out_small, ref_small, rtol=1e-5, atol=1e-6), (out_small, ref_small)

    # 2) Larger input through the Pallas kernel with forced small blocks so the
    #    multi-tile accumulation + masked-last-tile paths run (rows = 1200 is
    #    neither a multiple of 8*16 nor of the forced tile_rows).
    x_big = jax.nn.softmax(
        jax.random.uniform(k2, (4, 8, 48, 100), dtype=jnp.float32), axis=1)
    out_big = jax.block_until_ready(entropy_loss(x_big, max_block_bytes=64 * 1024))
    ref_big = _entropy_loss_ref(x_big)
    assert jnp.allclose(out_big, ref_big, rtol=1e-5, atol=1e-6), (out_big, ref_big)

    # 3) Same input through the default generation-sized tiles (single tile).
    out_def = jax.block_until_ready(entropy_loss(x_big))
    assert jnp.allclose(out_def, ref_big, rtol=1e-5, atol=1e-6), (out_def, ref_big)

    print("KERNEL_OK")
</pallas_src>

<mosaic_0001>
module attributes {stable_mosaic.version = 11 : i64} {
  func.func @_entropy_partial_kernel(%arg0: i32, %arg1: memref<128x128xf32, #tpu.memory_space<vmem>>, %arg2: memref<1x8x128xf32, #tpu.memory_space<vmem>>) attributes {dimension_semantics = [#tpu.dimension_semantics<arbitrary>], iteration_bounds = array<i64: 10>, scalar_prefetch = 0 : i64, scratch_operands = 0 : i64, tpu.core_type = #tpu.core_type<tc>, window_params = [{transform_indices = @transform_0, window_bounds = array<i64: 128, 128>}, {pipeline_mode = #tpu.pipeline_mode<synchronous>, transform_indices = @transform_1, window_bounds = array<i64: 1, 8, 128>}]} {
    %c0_i32 = arith.constant 0 : i32
    %0 = arith.cmpi eq, %arg0, %c0_i32 : i32
    %1 = arith.extui %0 : i1 to i32
    %c0_i32_0 = arith.constant 0 : i32
    %2 = arith.cmpi ne, %1, %c0_i32_0 : i32
    scf.if %2 {
      %cst = arith.constant 0.000000e+00 : f32
      %9 = vector.broadcast %cst : f32 to vector<1x8x128xf32>
      %c0 = arith.constant 0 : index
      %c0_4 = arith.constant 0 : index
      %c0_5 = arith.constant 0 : index
      %10 = vector.load %arg2[%c0, %c0_4, %c0_5] : memref<1x8x128xf32, #tpu.memory_space<vmem>>, vector<1x8x128xf32>
      tpu.vector_store %arg2[%c0, %c0_4, %c0_5], %9 {strides = array<i32>} : memref<1x8x128xf32, #tpu.memory_space<vmem>>, vector<1x8x128xf32>,
    } else {
    }
    %c9_i32 = arith.constant 9 : i32
    %3 = arith.cmpi slt, %arg0, %c9_i32 : i32
    %4 = arith.extui %3 : i1 to i32
    %c0_i32_1 = arith.constant 0 : i32
    %5 = arith.cmpi ne, %4, %c0_i32_1 : i32
    scf.if %5 {
      %c0 = arith.constant 0 : index
      %c0_4 = arith.constant 0 : index
      %9 = vector.load %arg1[%c0, %c0_4] : memref<128x128xf32, #tpu.memory_space<vmem>>, vector<128x128xf32>
      %cst = arith.constant 9.99999996E-13 : f32
      %10 = vector.broadcast %cst : f32 to vector<128x128xf32>
      %11 = arith.addf %9, %10 : vector<128x128xf32>
      %12 = math.log %11 : vector<128x128xf32>
      %13 = arith.mulf %9, %12 : vector<128x128xf32>
      %c0_5 = arith.constant 0 : index
      %c0_6 = arith.constant 0 : index
      %c0_7 = arith.constant 0 : index
      %14 = vector.load %arg2[%c0_5, %c0_6, %c0_7] : memref<1x8x128xf32, #tpu.memory_space<vmem>>, vector<1x8x128xf32>
      %15 = vector.shape_cast %13 : vector<128x128xf32> to vector<16x8x128xf32>
      %cst_8 = arith.constant dense<0.000000e+00> : vector<8x128xf32>
      %16 = vector.multi_reduction <add>, %15, %cst_8 [0] : vector<16x8x128xf32> to vector<8x128xf32>
      %17 = vector.shape_cast %16 : vector<8x128xf32> to vector<1x8x128xf32>
      %18 = arith.addf %14, %17 : vector<1x8x128xf32>
      %c0_9 = arith.constant 0 : index
      %c0_10 = arith.constant 0 : index
      %c0_11 = arith.constant 0 : index
      %19 = vector.load %arg2[%c0_9, %c0_10, %c0_11] : memref<1x8x128xf32, #tpu.memory_space<vmem>>, vector<1x8x128xf32>
      tpu.vector_store %arg2[%c0_9, %c0_10, %c0_11], %18 {strides = array<i32>} : memref<1x8x128xf32, #tpu.memory_space<vmem>>, vector<1x8x128xf32>,
    } else {
    }
    %c9_i32_2 = arith.constant 9 : i32
    %6 = arith.cmpi eq, %arg0, %c9_i32_2 : i32
    %7 = arith.extui %6 : i1 to i32
    %c0_i32_3 = arith.constant 0 : i32
    %8 = arith.cmpi ne, %7, %c0_i32_3 : i32
    scf.if %8 {
      %c0 = arith.constant 0 : index
      %c0_4 = arith.constant 0 : index
      %9 = vector.load %arg1[%c0, %c0_4] : memref<128x128xf32, #tpu.memory_space<vmem>>, vector<128x128xf32>
      %cst = arith.constant 9.99999996E-13 : f32
      %10 = vector.broadcast %cst : f32 to vector<128x128xf32>
      %11 = arith.addf %9, %10 : vector<128x128xf32>
      %12 = math.log %11 : vector<128x128xf32>
      %13 = arith.mulf %9, %12 : vector<128x128xf32>
      %c128_i32 = arith.constant 128 : i32
      %14 = arith.muli %arg0, %c128_i32 : i32
      %15 = tpu.iota {dimensions = array<i32: 0>} : vector<128x128xi32>
      %16 = vector.broadcast %14 : i32 to vector<128x128xi32>
      %17 = arith.addi %16, %15 : vector<128x128xi32>
      %c1200_i32 = arith.constant 1200 : i32
      %18 = vector.broadcast %c1200_i32 : i32 to vector<128x128xi32>
      %19 = arith.cmpi slt, %17, %18 : vector<128x128xi32>
      %cst_5 = arith.constant 0.000000e+00 : f32
      %20 = vector.broadcast %cst_5 : f32 to vector<128x128xf32>
      %21 = arith.select %19, %13, %20 : vector<128x128xi1>, vector<128x128xf32>
      %c0_6 = arith.constant 0 : index
      %c0_7 = arith.constant 0 : index
      %c0_8 = arith.constant 0 : index
      %22 = vector.load %arg2[%c0_6, %c0_7, %c0_8] : memref<1x8x128xf32, #tpu.memory_space<vmem>>, vector<1x8x128xf32>
      %23 = vector.shape_cast %21 : vector<128x128xf32> to vector<16x8x128xf32>
      %cst_9 = arith.constant dense<0.000000e+00> : vector<8x128xf32>
      %24 = vector.multi_reduction <add>, %23, %cst_9 [0] : vector<16x8x128xf32> to vector<8x128xf32>
      %25 = vector.shape_cast %24 : vector<8x128xf32> to vector<1x8x128xf32>
      %26 = arith.addf %22, %25 : vector<1x8x128xf32>
      %c0_10 = arith.constant 0 : index
      %c0_11 = arith.constant 0 : index
      %c0_12 = arith.constant 0 : index
      %27 = vector.load %arg2[%c0_10, %c0_11, %c0_12] : memref<1x8x128xf32, #tpu.memory_space<vmem>>, vector<1x8x128xf32>
      tpu.vector_store %arg2[%c0_10, %c0_11, %c0_12], %26 {strides = array<i32>} : memref<1x8x128xf32, #tpu.memory_space<vmem>>, vector<1x8x128xf32>,
    } else {
    }
    return
  }
  func.func @transform_0(%arg0: i32) -> (i32, i32) {
    %c0_i32 = arith.constant 0 : i32
    %c0_i32_0 = arith.constant 0 : i32
    return %arg0, %c0_i32 : i32, i32
  }
  func.func @transform_1(%arg0: i32) -> (i32, i32, i32) {
    %c0_i32 = arith.constant 0 : i32
    %c0_i32_0 = arith.constant 0 : i32
    %c0_i32_1 = arith.constant 0 : i32
    %c0_i32_2 = arith.constant 0 : i32
    return %c0_i32, %c0_i32_0, %c0_i32_1 : i32, i32, i32
  }
}

</mosaic_0001>

<llo_original>
// kernel: tpu_custom_call.1
$region0: #{tpu_custom_call.1}
  #allocation0 [shape = 'u32[]', space=smem, size = 0x4, offset = 0x4, fixed_abs, tag = 'smem constant byte address 0x4 - core index']
  #allocation1 [shape = 'u32[144,128]{1,0:T(1,128)}', space=vmem, size = 0x12000, scoped, tag = 'internal scratch']
  %s0 = inlined_call_operand.hbm [shape: f32[1200,128], index: 0, kind: input, shape index: {}]
  %s1 = inlined_call_operand.hbm [shape: f32[1,8,128], index: 1, kind: output, shape index: {}]
  %s2 = sld [smem:[#allocation0]]
  $region53: #{tpu_custom_call.1} parent=0
    _
  %s4 = ssub.s32 1, %s2
  %s5 = scalar_select 0, %s4, %s2
  $region1: #{tpu_custom_call.1} parent=0
    #allocation2 [shape = 'u8[131072]{0}', space=vmem, size = 0x20000, scoped, tag = 'input window, operand 0']
    #allocation3 [shape = 's32[2]{0}', space=sflag, size = 0x8, scoped, tag = 'scoped memory for tpu_custom_call.1']
    #allocation4 [shape = 's32[2]{0}', space=sflag, size = 0x8, scoped, tag = 'scoped memory for tpu_custom_call.1']
    #allocation5 [shape = 'u8[4096]{0}', space=vmem, size = 0x1000, scoped, tag = 'output window, operand 0, single buffered']
    %6 = vsyncpa [#allocation3], 0
    %s7 = scalar_lea.sflag [#allocation3], 1
    %8 = vsyncpa %s7, 0
    %9 = vsyncpa [#allocation4], 0
    loop: start=0, step=1, limit=12
    $region2: #{tpu_custom_call.1} parent=1 // loop_pre_header
      _
    $region3: #{tpu_custom_call.1} parent=1 // loop_header
      %s11 = sphi 0, %s15
      %p12 = scmp.ge.s32.totalorder %s11, 12
      %s21 = sphi 0, %s23
      %s24 = sphi 0, %s21
      %s25 = sphi 0, %s24
      %s41 = sphi 0, %s25
      %s45 = sphi 0, %s45
      %s47 = sphi 0, %s45
      %s48 = sphi 0, %s47
      %s62 = sphi 0, %s48
    $region4: #{tpu_custom_call.1} parent=1 // loop_header_branch
      %14 = sbr.rel (%p12) target = $region8
    $region5: #{tpu_custom_call.1} parent=1 // loop_body
      %s16 = ssub.s32 %s11, 1
      %s17 = ssub.s32 %s11, 2
      %s18 = sadd.s32 %s11, 1
      %s19 = ssub.s32 %s11, %s18
      %p20 = scmp.eq.s32.totalorder %s19, 0
      %s22 = sadd.s32 %s21, 1
      %s23 = scalar_select %p20, %s21, %s22
      %p26 = pneg %p20
      %p27 = scmp.eq.s32.totalorder %s11, 9
      %p28 = por %p26, %p27
      %p29 = scmp.ne.s32.totalorder %s21, %s24
      %p30 = scmp.eq.s32.totalorder %s11, 0
      %p31 = por %p29, %p30
      %p32 = scmp.ne.s32.totalorder %s21, %s24
      %p33 = scmp.eq.s32.totalorder %s16, 9
      %p34 = por %p32, %p33
      %p35 = scmp.ne.s32.totalorder %s24, %s25
      %p36 = scmp.eq.s32.totalorder %s16, 0
      %p37 = por %p35, %p36
      %p38 = scmp.ne.s32.totalorder %s24, %s25
      %p39 = scmp.eq.s32.totalorder %s17, 9
      %p40 = por %p38, %p39
      %p42 = scmp.ne.s32.totalorder %s25, %s41
      %p43 = scmp.eq.s32.totalorder %s17, 0
      %p44 = por %p42, %p43
      %s46 = sadd.s32 %s45, 1
      %p49 = scmp.eq.s32.totalorder %s11, 9
      %p50 = scmp.ne.s32.totalorder %s45, %s47
      %p51 = scmp.eq.s32.totalorder %s11, 0
      %p52 = por %p50, %p51
      %p53 = scmp.ne.s32.totalorder %s45, %s47
      %p54 = scmp.eq.s32.totalorder %s16, 9
      %p55 = por %p53, %p54
      %p56 = scmp.ne.s32.totalorder %s47, %s48
      %p57 = scmp.eq.s32.totalorder %s16, 0
      %p58 = por %p56, %p57
      %p59 = scmp.ne.s32.totalorder %s47, %s48
      %p60 = scmp.eq.s32.totalorder %s17, 9
      %p61 = por %p59, %p60
      %p63 = scmp.ne.s32.totalorder %s48, %s62
      %p64 = scmp.eq.s32.totalorder %s17, 0
      %p65 = por %p63, %p64
      %p66 = scmp.le.s32.totalorder 1, %s11
      %p67 = scmp.lt.s32.totalorder %s11, 11
      %p68 = pnand %p66, %p67
      %p69 = pneg %p68
      // Predicated region
      $region9: #{tpu_custom_call.1} parent=5 // pred_check
        _
      $region10: #{tpu_custom_call.1} parent=5 // pred_check_branch
        %71 = sbr.rel (%p68) target = $region12
      $region11: #{tpu_custom_call.1} parent=5 // pred_region
        %s72 = ssub.s32 %s11, 1
      $region12: #{tpu_custom_call.1} parent=5 // pred_fallthru
        _
      %p73 = scmp.lt.s32.totalorder %s11, 10
      // Predicated region
      $region13: #{tpu_custom_call.1} parent=5 // pred_check
        %p74 = pneg %p73
      $region14: #{tpu_custom_call.1} parent=5 // pred_check_branch
        %76 = sbr.rel (%p74) target = $region16
      $region15: #{tpu_custom_call.1} parent=5 // pred_region
        // Predicated region
        $region17: #{tpu_custom_call.1} parent=15 // pred_check
          %p77 = pneg %p31
        $region18: #{tpu_custom_call.1} parent=15 // pred_check_branch
          %79 = sbr.rel (%p77) target = $region20
        $region19: #{tpu_custom_call.1} parent=15 // pred_region
          %s80 = sand.u32 %s21, 1
          %s81 = scalar_lea.sflag [#allocation3], %s80
          %s82 = sand.u32 %s21, 1
          %s83 = smul.addr %s82, 128
          %s84 = scalar_lea.vmem [#allocation2], %s83
          %s85 = smul.u32 16, %s11
          %s86 = ssub.s32 150, %s85
          %p87 = scmp.lt.s32.totalorder %s86, 16
          %s88 = scalar_select %p87, %s86, 16
          %s89 = smul.u32 128, %s88
          %s91 = ssub.s32 2048, %s89
          %92 = vsyncadd %s81, %s91
          %p93 = scmp.ne.s32.totalorder 0, %s89
          %s94 = smul.addr %s85, 128
          %s95 = scalar_lea.hbm %s0, %s94
          %s96 = smul.u32 8, %s88
          %s97 = sshll.u32 %s84, 4
          %s98 = int_to_ptr.vmem [resolvable:$true] %s97
          %s99 = sshll.u32 %s96, 4
          %103 = dma.hbm_to_vmem [thread:$0]  (%p93), %s95, %s99, %s98, %s81, 128, 128, 8
        $region20: #{tpu_custom_call.1} parent=15 // pred_fallthru
          _
      $region16: #{tpu_custom_call.1} parent=5 // pred_fallthru
        _
      %p104 = scmp.le.s32.totalorder 1, %s11
      %p105 = scmp.lt.s32.totalorder %s11, 11
      %p106 = pnand %p104, %p105
      %p107 = pneg %p106
      // Predicated region
      $region21: #{tpu_custom_call.1} parent=5 // pred_check
        _
      $region22: #{tpu_custom_call.1} parent=5 // pred_check_branch
        %109 = sbr.rel (%p106) target = $region24
      $region23: #{tpu_custom_call.1} parent=5 // pred_region
        %s110 = ssub.s32 %s11, 1
        %s111 = sand.u32 %s24, 1
        %s112 = scalar_lea.sflag [#allocation3], %s111
        %s113 = sand.u32 %s24, 1
        %s114 = smul.addr %s113, 128
        %s115 = scalar_lea.vmem [#allocation2], %s114
        // Predicated region
        $region25: #{tpu_custom_call.1} parent=23 // pred_check
          %p116 = pneg %p37
        $region26: #{tpu_custom_call.1} parent=23 // pred_check_branch
          %118 = sbr.rel (%p116) target = $region28
        $region27: #{tpu_custom_call.1} parent=23 // pred_region
          %119 = dma.done %s112, 2048
        $region28: #{tpu_custom_call.1} parent=23 // pred_fallthru
          _
        %s120 = sand.u32 %s24, 1
        %s121 = scalar_lea.sflag [#allocation3], %s120
        %s122 = sand.u32 %s24, 1
        %s123 = smul.addr %s122, 128
        %s124 = scalar_lea.vmem [#allocation2], %s123
        %p125 = pneg %p37
        %p126 = pneg %p34
        %p127 = pneg %p58
        %p128 = pneg %p55
        %s129 = smul.u32 16, %s16
        %s130 = ssub.s32 150, %s129
        %p131 = scmp.lt.s32.totalorder %s130, 16
        %s132 = scalar_select %p131, %s130, 16
        %s133 = smul.u32 128, %s132
        %p134 = scmp.eq.s32.totalorder %s16, 0
        // Predicated region
        $region29: #{tpu_custom_call.1} parent=23 // pred_check
          %p135 = pneg %p134
        $region30: #{tpu_custom_call.1} parent=23 // pred_check_branch
          %137 = sbr.rel (%p135) target = $region32
        $region31: #{tpu_custom_call.1} parent=23 // pred_region
          %138 = vst [vmem:[#allocation5] sm:$0xff] 0.0
        $region32: #{tpu_custom_call.1} parent=23 // pred_fallthru
          _
        %p139 = scmp.lt.s32.totalorder %s16, 9
        // Predicated region
        $region33: #{tpu_custom_call.1} parent=23 // pred_check
          %p140 = pneg %p139
        $region34: #{tpu_custom_call.1} parent=23 // pred_check_branch
          %142 = sbr.rel (%p140) target = $region36
        $region35: #{tpu_custom_call.1} parent=23 // pred_region
          %v143 = vld [vmem:[%s115] sm:$0xff]
          %v144 = vld [vmem:[%s115 + $0x8] sm:$0xff]
          %v145 = vld [vmem:[%s115 + $0x10] sm:$0xff]
          %v146 = vld [vmem:[%s115 + $0x18] sm:$0xff]
          %v147 = vld [vmem:[%s115 + $0x20] sm:$0xff]
          %v148 = vld [vmem:[%s115 + $0x28] sm:$0xff]
          %v149 = vld [vmem:[%s115 + $0x30] sm:$0xff]
          %v150 = vld [vmem:[%s115 + $0x38] sm:$0xff]
          %v151 = vld [vmem:[%s115 + $0x40] sm:$0xff]
          %v152 = vld [vmem:[%s115 + $0x48] sm:$0xff]
          %v153 = vld [vmem:[%s115 + $0x50] sm:$0xff]
          %v154 = vld [vmem:[%s115 + $0x58] sm:$0xff]
          %v155 = vld [vmem:[%s115 + $0x60] sm:$0xff]
          %v156 = vld [vmem:[%s115 + $0x68] sm:$0xff]
          %v157 = vld [vmem:[%s115 + $0x70] sm:$0xff]
          %v158 = vld [vmem:[%s115 + $0x78] sm:$0xff]
          %v159 = vadd.f32 %v143, 1e-12
          %v160 = vadd.f32 %v144, 1e-12
          %v161 = vadd.f32 %v145, 1e-12
          %v162 = vadd.f32 %v146, 1e-12
          %v163 = vadd.f32 %v147, 1e-12
          %v164 = vadd.f32 %v148, 1e-12
          %v165 = vadd.f32 %v149, 1e-12
          %v166 = vadd.f32 %v150, 1e-12
          %v167 = vadd.f32 %v151, 1e-12
          %v168 = vadd.f32 %v152, 1e-12
          %v169 = vadd.f32 %v153, 1e-12
          %v170 = vadd.f32 %v154, 1e-12
          %v171 = vadd.f32 %v155, 1e-12
          %v172 = vadd.f32 %v156, 1e-12
          %v173 = vadd.f32 %v157, 1e-12
          %v174 = vadd.f32 %v158, 1e-12
          %v175 = vlog2.pop %v159
          %v176 = vmul.f32 %v175, 0.6931472
          %v177 = vlog2.pop %v160
          %v178 = vmul.f32 %v177, 0.6931472
          %v179 = vlog2.pop %v161
          %v180 = vmul.f32 %v179, 0.6931472
          %v181 = vlog2.pop %v162
          %v182 = vmul.f32 %v181, 0.6931472
          %v183 = vlog2.pop %v163
          %v184 = vmul.f32 %v183, 0.6931472
          %v185 = vlog2.pop %v164
          %v186 = vmul.f32 %v185, 0.6931472
          %v187 = vlog2.pop %v165
          %v188 = vmul.f32 %v187, 0.6931472
          %v189 = vlog2.pop %v166
          %v190 = vmul.f32 %v189, 0.6931472
          %v191 = vlog2.pop %v167
          %v192 = vmul.f32 %v191, 0.6931472
          %v193 = vlog2.pop %v168
          %v194 = vmul.f32 %v193, 0.6931472
          %v195 = vlog2.pop %v169
          %v196 = vmul.f32 %v195, 0.6931472
          %v197 = vlog2.pop %v170
          %v198 = vmul.f32 %v197, 0.6931472
          %v199 = vlog2.pop %v171
          %v200 = vmul.f32 %v199, 0.6931472
          %v201 = vlog2.pop %v172
          %v202 = vmul.f32 %v201, 0.6931472
          %v203 = vlog2.pop %v173
          %v204 = vmul.f32 %v203, 0.6931472
          %v205 = vlog2.pop %v174
          %v206 = vmul.f32 %v205, 0.6931472
          %v207 = vmul.f32 %v143, %v176
          %v208 = vmul.f32 %v144, %v178
          %v209 = vmul.f32 %v145, %v180
          %v210 = vmul.f32 %v146, %v182
          %v211 = vmul.f32 %v147, %v184
          %v212 = vmul.f32 %v148, %v186
          %v213 = vmul.f32 %v149, %v188
          %v214 = vmul.f32 %v150, %v190
          %v215 = vmul.f32 %v151, %v192
          %v216 = vmul.f32 %v152, %v194
          %v217 = vmul.f32 %v153, %v196
          %v218 = vmul.f32 %v154, %v198
          %v219 = vmul.f32 %v155, %v200
          %v220 = vmul.f32 %v156, %v202
          %v221 = vmul.f32 %v157, %v204
          %v222 = vmul.f32 %v158, %v206
          %v223 = vld [vmem:[#allocation5] sm:$0xff]
          %v224 = vadd.f32 %v207, %v208
          %v225 = vadd.f32 %v224, %v209
          %v226 = vadd.f32 %v225, %v210
          %v227 = vadd.f32 %v226, %v211
          %v228 = vadd.f32 %v227, %v212
          %v229 = vadd.f32 %v228, %v213
          %v230 = vadd.f32 %v229, %v214
          %v231 = vadd.f32 %v230, %v215
          %v232 = vadd.f32 %v231, %v216
          %v233 = vadd.f32 %v232, %v217
          %v234 = vadd.f32 %v233, %v218
          %v235 = vadd.f32 %v234, %v219
          %v236 = vadd.f32 %v235, %v220
          %v237 = vadd.f32 %v236, %v221
          %v238 = vadd.f32 %v237, %v222
          %v239 = vadd.f32 %v223, %v238
          %240 = vst [vmem:[#allocation5] sm:$0xff] %v239
        $region36: #{tpu_custom_call.1} parent=23 // pred_fallthru
          _
        %p241 = scmp.eq.s32.totalorder %s16, 9
        // Predicated region
        $region37: #{tpu_custom_call.1} parent=23 // pred_check
          %p242 = pneg %p241
        $region38: #{tpu_custom_call.1} parent=23 // pred_check_branch
          %244 = sbr.rel (%p242) target = $region40
        $region39: #{tpu_custom_call.1} parent=23 // pred_region
          %v245 = vld [vmem:[%s115] sm:$0xff]
          %v246 = vld [vmem:[%s115 + $0x8] sm:$0xff]
          %v247 = vld [vmem:[%s115 + $0x10] sm:$0xff]
          %v248 = vld [vmem:[%s115 + $0x18] sm:$0xff]
          %v249 = vld [vmem:[%s115 + $0x20] sm:$0xff]
          %v250 = vld [vmem:[%s115 + $0x28] sm:$0xff]
          %v251 = vld [vmem:[%s115 + $0x30] sm:$0xff]
          %v252 = vld [vmem:[%s115 + $0x38] sm:$0xff]
          %v253 = vld [vmem:[%s115 + $0x40] sm:$0xff]
          %v254 = vld [vmem:[%s115 + $0x48] sm:$0xff]
          %v255 = vld [vmem:[%s115 + $0x50] sm:$0xff]
          %v256 = vld [vmem:[%s115 + $0x58] sm:$0xff]
          %v257 = vld [vmem:[%s115 + $0x60] sm:$0xff]
          %v258 = vld [vmem:[%s115 + $0x68] sm:$0xff]
          %v259 = vld [vmem:[%s115 + $0x70] sm:$0xff]
          %v260 = vld [vmem:[%s115 + $0x78] sm:$0xff]
          %v261 = vadd.f32 %v245, 1e-12
          %v262 = vadd.f32 %v246, 1e-12
          %v263 = vadd.f32 %v247, 1e-12
          %v264 = vadd.f32 %v248, 1e-12
          %v265 = vadd.f32 %v249, 1e-12
          %v266 = vadd.f32 %v250, 1e-12
          %v267 = vadd.f32 %v251, 1e-12
          %v268 = vadd.f32 %v252, 1e-12
          %v269 = vadd.f32 %v253, 1e-12
          %v270 = vadd.f32 %v254, 1e-12
          %v271 = vadd.f32 %v255, 1e-12
          %v272 = vadd.f32 %v256, 1e-12
          %v273 = vadd.f32 %v257, 1e-12
          %v274 = vadd.f32 %v258, 1e-12
          %v275 = vadd.f32 %v259, 1e-12
          %v276 = vadd.f32 %v260, 1e-12
          %v277 = vlog2.pop %v261
          %v278 = vmul.f32 %v277, 0.6931472
          %v279 = vlog2.pop %v262
          %v280 = vmul.f32 %v279, 0.6931472
          %v281 = vlog2.pop %v263
          %v282 = vmul.f32 %v281, 0.6931472
          %v283 = vlog2.pop %v264
          %v284 = vmul.f32 %v283, 0.6931472
          %v285 = vlog2.pop %v265
          %v286 = vmul.f32 %v285, 0.6931472
          %v287 = vlog2.pop %v266
          %v288 = vmul.f32 %v287, 0.6931472
          %v289 = vlog2.pop %v267
          %v290 = vmul.f32 %v289, 0.6931472
          %v291 = vlog2.pop %v268
          %v292 = vmul.f32 %v291, 0.6931472
          %v293 = vlog2.pop %v269
          %v294 = vmul.f32 %v293, 0.6931472
          %v295 = vlog2.pop %v270
          %v296 = vmul.f32 %v295, 0.6931472
          %v297 = vlog2.pop %v271
          %v298 = vmul.f32 %v297, 0.6931472
          %v299 = vlog2.pop %v272
          %v300 = vmul.f32 %v299, 0.6931472
          %v301 = vlog2.pop %v273
          %v302 = vmul.f32 %v301, 0.6931472
          %v303 = vlog2.pop %v274
          %v304 = vmul.f32 %v303, 0.6931472
          %v305 = vlog2.pop %v275
          %v306 = vmul.f32 %v305, 0.6931472
          %v307 = vlog2.pop %v276
          %v308 = vmul.f32 %v307, 0.6931472
          %v309 = vmul.f32 %v245, %v278
          %v310 = vmul.f32 %v246, %v280
          %v311 = vmul.f32 %v247, %v282
          %v312 = vmul.f32 %v248, %v284
          %v313 = vmul.f32 %v249, %v286
          %v314 = vmul.f32 %v250, %v288
          %v315 = vmul.f32 %v251, %v290
          %v316 = vmul.f32 %v252, %v292
          %v317 = vmul.f32 %v253, %v294
          %v318 = vmul.f32 %v254, %v296
          %v319 = vmul.f32 %v255, %v298
          %v320 = vmul.f32 %v256, %v300
          %v321 = vmul.f32 %v257, %v302
          %v322 = vmul.f32 %v258, %v304
          %v323 = vmul.f32 %v259, %v306
          %v324 = vmul.f32 %v260, %v308
          %s325 = smul.u32 %s16, 128
          %v326 = vlaneseq
          %v327 = vshrl.u32 %v326, 7
          %v328 = vadd.s32 %v327, 8
          %v329 = vadd.s32 %v327, 16
          %v330 = vadd.s32 %v327, 24
          %v331 = vadd.s32 %v327, 32
          %v332 = vadd.s32 %v327, 40
          %v333 = vadd.s32 %v327, 48
          %v334 = vadd.s32 %v327, 56
          %v335 = vadd.s32 %v327, 64
          %v336 = vadd.s32 %v327, 72
          %v337 = vadd.s32 %v327, 80
          %v338 = vadd.s32 %v327, 88
          %v339 = vadd.s32 %v327, 96
          %v340 = vadd.s32 %v327, 104
          %v341 = vadd.s32 %v327, 112
          %v342 = vadd.s32 %v327, 120
          %v343 = vstv %s325
          %v344 = vadd.s32 %v343, %v327
          %v345 = vadd.s32 %v343, %v328
          %v346 = vadd.s32 %v343, %v329
          %v347 = vadd.s32 %v343, %v330
          %v348 = vadd.s32 %v343, %v331
          %v349 = vadd.s32 %v343, %v332
          %v350 = vadd.s32 %v343, %v333
          %v351 = vadd.s32 %v343, %v334
          %v352 = vadd.s32 %v343, %v335
          %v353 = vadd.s32 %v343, %v336
          %v354 = vadd.s32 %v343, %v337
          %v355 = vadd.s32 %v343, %v338
          %v356 = vadd.s32 %v343, %v339
          %v357 = vadd.s32 %v343, %v340
          %v358 = vadd.s32 %v343, %v341
          %v359 = vadd.s32 %v343, %v342
          %vm360 = vcmp.lt.s32.totalorder %v344, 1200
          %vm361 = vcmp.lt.s32.totalorder %v345, 1200
          %vm362 = vcmp.lt.s32.totalorder %v346, 1200
          %vm363 = vcmp.lt.s32.totalorder %v347, 1200
          %vm364 = vcmp.lt.s32.totalorder %v348, 1200
          %vm365 = vcmp.lt.s32.totalorder %v349, 1200
          %vm366 = vcmp.lt.s32.totalorder %v350, 1200
          %vm367 = vcmp.lt.s32.totalorder %v351, 1200
          %vm368 = vcmp.lt.s32.totalorder %v352, 1200
          %vm369 = vcmp.lt.s32.totalorder %v353, 1200
          %vm370 = vcmp.lt.s32.totalorder %v354, 1200
          %vm371 = vcmp.lt.s32.totalorder %v355, 1200
          %vm372 = vcmp.lt.s32.totalorder %v356, 1200
          %vm373 = vcmp.lt.s32.totalorder %v357, 1200
          %vm374 = vcmp.lt.s32.totalorder %v358, 1200
          %vm375 = vcmp.lt.s32.totalorder %v359, 1200
          %v376 = vsel %vm360, %v309, 0.0
          %v377 = vsel %vm361, %v310, 0.0
          %v378 = vsel %vm362, %v311, 0.0
          %v379 = vsel %vm363, %v312, 0.0
          %v380 = vsel %vm364, %v313, 0.0
          %v381 = vsel %vm365, %v314, 0.0
          %v382 = vsel %vm366, %v315, 0.0
          %v383 = vsel %vm367, %v316, 0.0
          %v384 = vsel %vm368, %v317, 0.0
          %v385 = vsel %vm369, %v318, 0.0
          %v386 = vsel %vm370, %v319, 0.0
          %v387 = vsel %vm371, %v320, 0.0
          %v388 = vsel %vm372, %v321, 0.0
          %v389 = vsel %vm373, %v322, 0.0
          %v390 = vsel %vm374, %v323, 0.0
          %v391 = vsel %vm375, %v324, 0.0
          %v392 = vld [vmem:[#allocation5] sm:$0xff]
          %v393 = vadd.f32 %v376, %v377
          %v394 = vadd.f32 %v393, %v378
          %v395 = vadd.f32 %v394, %v379
          %v396 = vadd.f32 %v395, %v380
          %v397 = vadd.f32 %v396, %v381
          %v398 = vadd.f32 %v397, %v382
          %v399 = vadd.f32 %v398, %v383
          %v400 = vadd.f32 %v399, %v384
          %v401 = vadd.f32 %v400, %v385
          %v402 = vadd.f32 %v401, %v386
          %v403 = vadd.f32 %v402, %v387
          %v404 = vadd.f32 %v403, %v388
          %v405 = vadd.f32 %v404, %v389
          %v406 = vadd.f32 %v405, %v390
          %v407 = vadd.f32 %v406, %v391
          %v408 = vadd.f32 %v392, %v407
          %409 = vst [vmem:[#allocation5] sm:$0xff] %v408
        $region40: #{tpu_custom_call.1} parent=23 // pred_fallthru
          _
        // Predicated region
        $region41: #{tpu_custom_call.1} parent=23 // pred_check
          %p410 = pneg %p55
        $region42: #{tpu_custom_call.1} parent=23 // pred_check_branch
          %412 = sbr.rel (%p410) target = $region44
        $region43: #{tpu_custom_call.1} parent=23 // pred_region
          %s414 = ssub.s32 128, 128
          %415 = vsyncadd [#allocation4], %s414
          %s417 = sshll.u32 [#allocation5], 4
          %s418 = int_to_ptr.vmem [resolvable:$true] %s417
          %420 = dma.vmem_to_hbm [thread:$0]  %s418, 128, %s1, [#allocation4]
        $region44: #{tpu_custom_call.1} parent=23 // pred_fallthru
          _
        // Predicated region
        $region45: #{tpu_custom_call.1} parent=23 // pred_check
          %p421 = pneg %p55
        $region46: #{tpu_custom_call.1} parent=23 // pred_check_branch
          %423 = sbr.rel (%p421) target = $region48
        $region47: #{tpu_custom_call.1} parent=23 // pred_region
          %424 = dma.done [#allocation4], 128
        $region48: #{tpu_custom_call.1} parent=23 // pred_fallthru
          _
      $region24: #{tpu_custom_call.1} parent=5 // pred_fallthru
        _
      %p425 = scmp.le.s32.totalorder 2, %s11
      // Predicated region
      $region49: #{tpu_custom_call.1} parent=5 // pred_check
        %p426 = pneg %p425
      $region50: #{tpu_custom_call.1} parent=5 // pred_check_branch
        %428 = sbr.rel (%p426) target = $region52
      $region51: #{tpu_custom_call.1} parent=5 // pred_region
        %s429 = ssub.s32 %s11, 2
      $region52: #{tpu_custom_call.1} parent=5 // pred_fallthru
        _
    $region6: #{tpu_custom_call.1} parent=1 // loop_footer
      %s15 = sadd.s32 1, %s11
    $region7: #{tpu_custom_call.1} parent=1 // loop_footer_branch
      %10 = sbr.rel target = $region3
    $region8: #{tpu_custom_call.1} parent=1 // loop_exit
      _
    %430 = vsyncpa [#allocation3], 1
    %s431 = scalar_lea.sflag [#allocation3], 1
    %432 = vsyncpa %s431, 1
    %433 = vsyncpa [#allocation4], 1
    %s434 = scalar_lea.sflag [#allocation4], 1
    %435 = vsyncpa %s434, 1

</llo_original>
